<compile_context>
chip_gen: v7x
topology: tpu7x:2x2x1
jax: 0.10.0
libtpu: 0.0.40
codegen_flags: <defaults>
</compile_context>

<pallas_src>
import math

import jax
import jax.numpy as jnp
from jax.experimental import pallas as pl
from jax.experimental.pallas import tpu as pltpu


def _max_attention_kernel(x_ref, w_ref, b_ref, o_ref):
    # x_ref: (1, d, TT_TILE, Ts) VMEM block (one batch element, one Tt tile)
    # w_ref: (d, 1) VMEM  -- Linear(in_channels, 1) weight (transposed)
    # b_ref: (1,)   SMEM  -- Linear bias
    # o_ref: (1, 2d, TT_TILE) VMEM output block
    x = x_ref[0]                        # (d, tt, Ts), float32
    w = w_ref[...]                      # (d, 1)
    b = b_ref[0]                        # scalar
    d, tt, ts = x.shape

    # --- attention scores: Linear(d -> 1) across the channel axis ---
    # scores[t, s] = sum_d x[d, t, s] * w[d] + b
    scores = jnp.sum(x * w[:, :, None], axis=0) + b            # (tt, Ts)
    a = jnp.tanh(scores)                                       # nonlin = tanh

    # --- unnormalized softmax over the Ts (lane) axis ---
    m = jnp.max(a, axis=-1, keepdims=True)                     # (tt, 1)
    p = jnp.exp(a - m)                                         # (tt, Ts)
    denom = jnp.sum(p, axis=-1, keepdims=True)                 # (tt, 1)

    # Fold softmax normalization + mean(1/Ts) + sqrt(Ts) scale into one
    # per-row factor (exact reciprocal keeps 1e-5 tolerance).
    row_scale = jnp.float32(math.sqrt(ts) / ts) * pl.reciprocal(
        denom, approx=False)                                   # (tt, 1)
    alpha_s = p * row_scale                                    # (tt, Ts)

    # --- context = sum_Ts(alpha_scaled * x)  (scale already folded in) ---
    ctx = jnp.sum(alpha_s[None, :, :] * x, axis=-1)            # (d, tt)

    # --- Xpool = max over Ts ---
    xpool = jnp.max(x, axis=-1)                                # (d, tt)

    # Direct slice stores (no concatenate temporary).
    o_ref[0, :d, :] = xpool
    o_ref[0, d:, :] = ctx


def _pick_tt_tile(d, tt_total, ts, itemsize, block_bytes):
    """Largest Tt tile that divides Tt, keeps the output last dim a multiple
    of 128 (or the full Tt), and keeps the x block under `block_bytes`."""
    if tt_total % 128 != 0:
        # Can't tile Tt without breaking the (8,128) / lane-density rules;
        # fall back to the full extent (fine for small Tt).
        return tt_total
    best = 128
    t = 128
    while t <= tt_total:
        if tt_total % t == 0 and d * t * ts * itemsize <= block_bytes:
            best = t
        t += 128
    return best


def max_attention(x, w, b, *, block_bytes=2 << 20):
    """x: (N, d, Tt, Ts) f32; w: (d, 1) f32; b: (1,) f32 -> (N, 2d, Tt) f32."""
    N, d, Tt, Ts = x.shape
    tt = _pick_tt_tile(d, Tt, Ts, x.dtype.itemsize, block_bytes)
    grid = (N, Tt // tt)
    return pl.pallas_call(
        _max_attention_kernel,
        out_shape=jax.ShapeDtypeStruct((N, 2 * d, Tt), x.dtype),
        grid=grid,
        in_specs=[
            pl.BlockSpec((1, d, tt, Ts), lambda n, t: (n, 0, t, 0)),
            pl.BlockSpec((d, 1), lambda n, t: (0, 0)),
            pl.BlockSpec(memory_space=pltpu.MemorySpace.SMEM),
        ],
        out_specs=pl.BlockSpec((1, 2 * d, tt), lambda n, t: (n, 0, t)),
        compiler_params=pltpu.CompilerParams(
            dimension_semantics=("parallel", "parallel"),
            vmem_limit_bytes=32 * 1024 * 1024,
        ),
    )(x, w, b)


def max_attention_ref(x, w, b):
    """Pure-JAX reference of the PyTorch forward (track=False)."""
    N, d, Tt, Ts = x.shape
    xatt = jnp.transpose(x, (0, 2, 3, 1))                      # (N, Tt, Ts, d)
    scores = jnp.einsum("ntsd,dk->ntsk", xatt, w) + b          # (N, Tt, Ts, 1)
    a = jnp.tanh(scores)
    alpha = jax.nn.softmax(a, axis=2)
    ctx = jnp.mean(alpha * xatt, axis=2)                       # (N, Tt, d)
    ctx = jnp.transpose(ctx, (0, 2, 1)) * jnp.float32(math.sqrt(Ts))
    xpool = jnp.max(x, axis=3)                                 # (N, d, Tt)
    return jnp.concatenate([xpool, ctx], axis=1)


if __name__ == "__main__":
    key = jax.random.PRNGKey(0)
    kx, kw, kb, kx2, kw2 = jax.random.split(key, 5)

    # --- small test shape (single Tt tile) ---
    N, d, Tt, Ts = 2, 8, 16, 16
    x = jax.random.normal(kx, (N, d, Tt, Ts), dtype=jnp.float32)
    w = jax.random.normal(kw, (d, 1), dtype=jnp.float32) * (1.0 / math.sqrt(d))
    b = jax.random.normal(kb, (1,), dtype=jnp.float32) * 0.1

    out = jax.block_until_ready(max_attention(x, w, b))
    ref = max_attention_ref(x, w, b)
    assert out.shape == (N, 2 * d, Tt)
    assert jnp.allclose(out, ref, atol=1e-5, rtol=1e-5)

    # --- shape that exercises real Tt tiling (TT_TILE=128, grid=(N, 2)) ---
    N2, d2, Tt2, Ts2 = 2, 8, 256, 16
    x2 = jax.random.normal(kx2, (N2, d2, Tt2, Ts2), dtype=jnp.float32)
    w2 = jax.random.normal(kw2, (d2, 1), dtype=jnp.float32) * (1.0 / math.sqrt(d2))
    out2 = jax.block_until_ready(
        max_attention(x2, w2, b, block_bytes=d2 * 128 * Ts2 * 4))
    ref2 = max_attention_ref(x2, w2, b)
    assert out2.shape == (N2, 2 * d2, Tt2)
    assert jnp.allclose(out2, ref2, atol=1e-5, rtol=1e-5)

    # TODO(synk): track=True path (numpy alignment diagnostics) and the
    # 'truncated-max' aggregator (per-sample ragged lengths) are host-side /
    # data-dependent and not implemented in the kernel.
    print("KERNEL_OK")
</pallas_src>

<mosaic_0001>
module attributes {stable_mosaic.version = 11 : i64} {
  func.func @_max_attention_kernel(%arg0: i32, %arg1: i32, %arg2: memref<1x8x16x16xf32, #tpu.memory_space<vmem>>, %arg3: memref<8x1xf32, #tpu.memory_space<vmem>>, %arg4: memref<1xf32, #tpu.memory_space<smem>>, %arg5: memref<1x16x16xf32, #tpu.memory_space<vmem>>) attributes {dimension_semantics = [#tpu.dimension_semantics<parallel>, #tpu.dimension_semantics<parallel>], iteration_bounds = array<i64: 2, 1>, scalar_prefetch = 0 : i64, scratch_operands = 0 : i64, tpu.core_type = #tpu.core_type<tc>, window_params = [{transform_indices = @transform_0, window_bounds = array<i64: 1, 8, 16, 16>}, {pipeline_mode = #tpu.pipeline_mode<synchronous>, transform_indices = @transform_1, window_bounds = array<i64: 8, 1>}, {transform_indices = @transform_2, window_bounds = array<i64: 1>}, {transform_indices = @transform_3, window_bounds = array<i64: 1, 16, 16>}]} {
    %c0 = arith.constant 0 : index
    %c0_0 = arith.constant 0 : index
    %c0_1 = arith.constant 0 : index
    %c0_2 = arith.constant 0 : index
    %0 = vector.load %arg2[%c0, %c0_0, %c0_1, %c0_2] : memref<1x8x16x16xf32, #tpu.memory_space<vmem>>, vector<1x8x16x16xf32>
    %1 = vector.shape_cast %0 : vector<1x8x16x16xf32> to vector<8x16x16xf32>
    %c0_3 = arith.constant 0 : index
    %c0_4 = arith.constant 0 : index
    %2 = vector.load %arg3[%c0_3, %c0_4] : memref<8x1xf32, #tpu.memory_space<vmem>>, vector<8x1xf32>
    %c0_5 = arith.constant 0 : index
    %3 = memref.load %arg4[%c0_5] : memref<1xf32, #tpu.memory_space<smem>>
    %4 = vector.shape_cast %2 : vector<8x1xf32> to vector<8x1x1xf32>
    %5 = vector.broadcast %4 : vector<8x1x1xf32> to vector<8x16x16xf32>
    %6 = arith.mulf %1, %5 : vector<8x16x16xf32>
    %cst = arith.constant dense<0.000000e+00> : vector<16x16xf32>
    %7 = vector.multi_reduction <add>, %6, %cst [0] : vector<8x16x16xf32> to vector<16x16xf32>
    %8 = vector.broadcast %3 : f32 to vector<16x16xf32>
    %9 = arith.addf %7, %8 : vector<16x16xf32>
    %10 = math.tanh %9 : vector<16x16xf32>
    %cst_6 = arith.constant dense<0xFF800000> : vector<16xf32>
    %11 = vector.multi_reduction <maximumf>, %10, %cst_6 [1] : vector<16x16xf32> to vector<16xf32>
    %12 = vector.shape_cast %11 : vector<16xf32> to vector<16x1xf32>
    %13 = vector.broadcast %12 : vector<16x1xf32> to vector<16x16xf32>
    %14 = arith.subf %10, %13 : vector<16x16xf32>
    %15 = math.exp %14 : vector<16x16xf32>
    %cst_7 = arith.constant dense<0.000000e+00> : vector<16xf32>
    %16 = vector.multi_reduction <add>, %15, %cst_7 [1] : vector<16x16xf32> to vector<16xf32>
    %17 = vector.shape_cast %16 : vector<16xf32> to vector<16x1xf32>
    %18 = tpu.reciprocal %17 : vector<16x1xf32> -> vector<16x1xf32>
    %cst_8 = arith.constant 2.500000e-01 : f32
    %19 = vector.broadcast %cst_8 : f32 to vector<16x1xf32>
    %20 = arith.mulf %19, %18 : vector<16x1xf32>
    %21 = vector.broadcast %20 : vector<16x1xf32> to vector<16x16xf32>
    %22 = arith.mulf %15, %21 : vector<16x16xf32>
    %23 = vector.shape_cast %22 : vector<16x16xf32> to vector<1x16x16xf32>
    %24 = vector.broadcast %23 : vector<1x16x16xf32> to vector<8x16x16xf32>
    %25 = arith.mulf %24, %1 : vector<8x16x16xf32>
    %cst_9 = arith.constant dense<0.000000e+00> : vector<8x16xf32>
    %26 = vector.multi_reduction <add>, %25, %cst_9 [2] : vector<8x16x16xf32> to vector<8x16xf32>
    %cst_10 = arith.constant dense<0xFF800000> : vector<8x16xf32>
    %27 = vector.multi_reduction <maximumf>, %1, %cst_10 [2] : vector<8x16x16xf32> to vector<8x16xf32>
    %c0_11 = arith.constant 0 : index
    %c0_12 = arith.constant 0 : index
    %c0_13 = arith.constant 0 : index
    %28 = vector.load %arg5[%c0_11, %c0_12, %c0_13] : memref<1x16x16xf32, #tpu.memory_space<vmem>>, vector<1x8x16xf32>
    %29 = vector.shape_cast %28 : vector<1x8x16xf32> to vector<8x16xf32>
    %30 = vector.shape_cast %27 : vector<8x16xf32> to vector<1x8x16xf32>
    tpu.vector_store %arg5[%c0_11, %c0_12, %c0_13], %30 {strides = array<i32>} : memref<1x16x16xf32, #tpu.memory_space<vmem>>, vector<1x8x16xf32>,
    %c0_14 = arith.constant 0 : index
    %c8 = arith.constant 8 : index
    %c0_15 = arith.constant 0 : index
    %31 = vector.load %arg5[%c0_14, %c8, %c0_15] : memref<1x16x16xf32, #tpu.memory_space<vmem>>, vector<1x8x16xf32>
    %32 = vector.shape_cast %31 : vector<1x8x16xf32> to vector<8x16xf32>
    %33 = vector.shape_cast %26 : vector<8x16xf32> to vector<1x8x16xf32>
    tpu.vector_store %arg5[%c0_14, %c8, %c0_15], %33 {strides = array<i32>} : memref<1x16x16xf32, #tpu.memory_space<vmem>>, vector<1x8x16xf32>,
    return
  }
  func.func @transform_0(%arg0: i32, %arg1: i32) -> (i32, i32, i32, i32) {
    %c0_i32 = arith.constant 0 : i32
    %c0_i32_0 = arith.constant 0 : i32
    %c0_i32_1 = arith.constant 0 : i32
    return %arg0, %c0_i32, %arg1, %c0_i32_0 : i32, i32, i32, i32
  }
  func.func @transform_1(%arg0: i32, %arg1: i32) -> (i32, i32) {
    %c0_i32 = arith.constant 0 : i32
    %c0_i32_0 = arith.constant 0 : i32
    %c0_i32_1 = arith.constant 0 : i32
    return %c0_i32, %c0_i32_0 : i32, i32
  }
  func.func @transform_2(%arg0: i32, %arg1: i32) -> i32 {
    %c0_i32 = arith.constant 0 : i32
    %c0_i32_0 = arith.constant 0 : i32
    return %c0_i32 : i32
  }
  func.func @transform_3(%arg0: i32, %arg1: i32) -> (i32, i32, i32) {
    %c0_i32 = arith.constant 0 : i32
    %c0_i32_0 = arith.constant 0 : i32
    return %arg0, %c0_i32, %arg1 : i32, i32, i32
  }
}

</mosaic_0001>

<llo_original>
// kernel: tpu_custom_call.1
$region0: #{tpu_custom_call.1}
  #allocation0 [shape = 'u32[]', space=smem, size = 0x4, offset = 0x4, fixed_abs, tag = 'smem constant byte address 0x4 - core index']
  #allocation1 [shape = 'u32[144,128]{1,0:T(1,128)}', space=vmem, size = 0x12000, scoped, tag = 'internal scratch']
  #allocation2 [shape = 'f32[1]{0:T(128)S(6)}', space=smem, size = 0x200, scoped, tag = 'scoped memory for tpu_custom_call.1']
  %s0 = inlined_call_operand.hbm [shape: f32[2,8,16,16], index: 0, kind: input, shape index: {}]
  %s1 = inlined_call_operand.vmem [shape: f32[8,1], index: 1, kind: input, shape index: {}]
  %s2 = inlined_call_operand.<no memory space> [shape: f32[1], index: 2, kind: input, shape index: {}]
  %s3 = inlined_call_operand.hbm [shape: f32[2,16,16], index: 3, kind: output, shape index: {}]
  %s4 = sld [smem:[#allocation0]]
  $region49: #{tpu_custom_call.1} parent=0
    _
  %s6 = ssub.s32 1, %s4
  %s7 = scalar_select 0, %s6, %s4
  %8 = sst [smem:[#allocation2]] %s2
  $region1: #{tpu_custom_call.1} parent=0
    #allocation3 [shape = 'u8[131072]{0}', space=vmem, size = 0x20000, scoped, tag = 'input window, operand 0']
    #allocation4 [shape = 's32[2]{0}', space=sflag, size = 0x8, scoped, tag = 'scoped memory for tpu_custom_call.1']
    #allocation5 [shape = 's32[2]{0}', space=sflag, size = 0x8, scoped, tag = 'scoped memory for tpu_custom_call.1']
    #allocation6 [shape = 'u8[16384]{0}', space=vmem, size = 0x4000, scoped, tag = 'output window, operand 0']
    %9 = vsyncpa [#allocation4], 0
    %s10 = scalar_lea.sflag [#allocation4], 1
    %11 = vsyncpa %s10, 0
    %12 = vsyncpa [#allocation5], 0
    %s13 = scalar_lea.sflag [#allocation5], 1
    %14 = vsyncpa %s13, 0
    loop: start=0, step=1, limit=4
    $region2: #{tpu_custom_call.1} parent=1 // loop_pre_header
      _
    $region3: #{tpu_custom_call.1} parent=1 // loop_header
      %s16 = sphi 0, %s20
      %p17 = scmp.ge.s32.totalorder %s16, 4
      %s23 = sphi 0, %s35
      %s24 = sphi 0, %s31
      %s25 = sphi 0, %s23
      %s26 = sphi 0, %s24
      %s27 = sphi 0, %s25
      %s28 = sphi 0, %s26
      %s40 = sphi 0, %s42
      %s43 = sphi 0, %s40
      %s44 = sphi 0, %s43
      %s60 = sphi 0, %s44
      %s64 = sphi 0, %s64
      %s66 = sphi 0, %s64
      %s67 = sphi 0, %s66
      %s81 = sphi 0, %s67
      %s85 = sphi 0, %s85
      %s87 = sphi 0, %s85
      %s88 = sphi 0, %s87
      %s102 = sphi 0, %s88
      %s110 = sphi 0, %s112
      %s113 = sphi 0, %s110
      %s114 = sphi 0, %s113
      %s130 = sphi 0, %s114
    $region4: #{tpu_custom_call.1} parent=1 // loop_header_branch
      %19 = sbr.rel (%p17) target = $region8
    $region5: #{tpu_custom_call.1} parent=1 // loop_body
      %s21 = ssub.s32 %s16, 1
      %s22 = ssub.s32 %s16, 2
      %s29 = sadd.s32 1, %s24
      %p30 = scmp.ge.s32.totalorder %s29, 1
      %s31 = scalar_select %p30, 0, %s29
      %s32 = sadd.s32 1, %s23
      %s33 = scalar_select %p30, %s32, %s23
      %p34 = scmp.ge.s32.totalorder %s33, 2
      %s35 = scalar_select %p34, 0, %s33
      %s36 = ssub.s32 %s23, %s35
      %s37 = ssub.s32 %s24, %s31
      %s38 = sor.u32 %s36, %s37
      %p39 = scmp.eq.s32.totalorder %s38, 0
      %s41 = sadd.s32 %s40, 1
      %s42 = scalar_select %p39, %s40, %s41
      %p45 = pneg %p39
      %p46 = scmp.eq.s32.totalorder %s16, 1
      %p47 = por %p45, %p46
      %p48 = scmp.ne.s32.totalorder %s40, %s43
      %p49 = scmp.eq.s32.totalorder %s16, 0
      %p50 = por %p48, %p49
      %p51 = scmp.ne.s32.totalorder %s40, %s43
      %p52 = scmp.eq.s32.totalorder %s21, 1
      %p53 = por %p51, %p52
      %p54 = scmp.ne.s32.totalorder %s43, %s44
      %p55 = scmp.eq.s32.totalorder %s21, 0
      %p56 = por %p54, %p55
      %p57 = scmp.ne.s32.totalorder %s43, %s44
      %p58 = scmp.eq.s32.totalorder %s22, 1
      %p59 = por %p57, %p58
      %p61 = scmp.ne.s32.totalorder %s44, %s60
      %p62 = scmp.eq.s32.totalorder %s22, 0
      %p63 = por %p61, %p62
      %s65 = sadd.s32 %s64, 1
      %p68 = scmp.eq.s32.totalorder %s16, 1
      %p69 = scmp.ne.s32.totalorder %s64, %s66
      %p70 = scmp.eq.s32.totalorder %s16, 0
      %p71 = por %p69, %p70
      %p72 = scmp.ne.s32.totalorder %s64, %s66
      %p73 = scmp.eq.s32.totalorder %s21, 1
      %p74 = por %p72, %p73
      %p75 = scmp.ne.s32.totalorder %s66, %s67
      %p76 = scmp.eq.s32.totalorder %s21, 0
      %p77 = por %p75, %p76
      %p78 = scmp.ne.s32.totalorder %s66, %s67
      %p79 = scmp.eq.s32.totalorder %s22, 1
      %p80 = por %p78, %p79
      %p82 = scmp.ne.s32.totalorder %s67, %s81
      %p83 = scmp.eq.s32.totalorder %s22, 0
      %p84 = por %p82, %p83
      %s86 = sadd.s32 %s85, 1
      %p89 = scmp.eq.s32.totalorder %s16, 1
      %p90 = scmp.ne.s32.totalorder %s85, %s87
      %p91 = scmp.eq.s32.totalorder %s16, 0
      %p92 = por %p90, %p91
      %p93 = scmp.ne.s32.totalorder %s85, %s87
      %p94 = scmp.eq.s32.totalorder %s21, 1
      %p95 = por %p93, %p94
      %p96 = scmp.ne.s32.totalorder %s87, %s88
      %p97 = scmp.eq.s32.totalorder %s21, 0
      %p98 = por %p96, %p97
      %p99 = scmp.ne.s32.totalorder %s87, %s88
      %p100 = scmp.eq.s32.totalorder %s22, 1
      %p101 = por %p99, %p100
      %p103 = scmp.ne.s32.totalorder %s88, %s102
      %p104 = scmp.eq.s32.totalorder %s22, 0
      %p105 = por %p103, %p104
      %s106 = ssub.s32 %s23, %s35
      %s107 = ssub.s32 %s24, %s31
      %s108 = sor.u32 %s106, %s107
      %p109 = scmp.eq.s32.totalorder %s108, 0
      %s111 = sadd.s32 %s110, 1
      %s112 = scalar_select %p109, %s110, %s111
      %p115 = pneg %p109
      %p116 = scmp.eq.s32.totalorder %s16, 1
      %p117 = por %p115, %p116
      %p118 = scmp.ne.s32.totalorder %s110, %s113
      %p119 = scmp.eq.s32.totalorder %s16, 0
      %p120 = por %p118, %p119
      %p121 = scmp.ne.s32.totalorder %s110, %s113
      %p122 = scmp.eq.s32.totalorder %s21, 1
      %p123 = por %p121, %p122
      %p124 = scmp.ne.s32.totalorder %s113, %s114
      %p125 = scmp.eq.s32.totalorder %s21, 0
      %p126 = por %p124, %p125
      %p127 = scmp.ne.s32.totalorder %s113, %s114
      %p128 = scmp.eq.s32.totalorder %s22, 1
      %p129 = por %p127, %p128
      %p131 = scmp.ne.s32.totalorder %s114, %s130
      %p132 = scmp.eq.s32.totalorder %s22, 0
      %p133 = por %p131, %p132
      %p134 = scmp.le.s32.totalorder 1, %s16
      %p135 = scmp.lt.s32.totalorder %s16, 3
      %p136 = pnand %p134, %p135
      %p137 = pneg %p136
      // Predicated region
      $region9: #{tpu_custom_call.1} parent=5 // pred_check
        _
      $region10: #{tpu_custom_call.1} parent=5 // pred_check_branch
        %139 = sbr.rel (%p136) target = $region12
      $region11: #{tpu_custom_call.1} parent=5 // pred_region
        %s140 = ssub.s32 %s16, 1
        // Predicated region
        $region13: #{tpu_custom_call.1} parent=11 // pred_check
          %p141 = pneg %p77
        $region14: #{tpu_custom_call.1} parent=11 // pred_check_branch
          %143 = sbr.rel (%p141) target = $region16
        $region15: #{tpu_custom_call.1} parent=11 // pred_region
          _
        $region16: #{tpu_custom_call.1} parent=11 // pred_fallthru
          _
        // Predicated region
        $region17: #{tpu_custom_call.1} parent=11 // pred_check
          %p144 = pneg %p98
        $region18: #{tpu_custom_call.1} parent=11 // pred_check_branch
          %146 = sbr.rel (%p144) target = $region20
        $region19: #{tpu_custom_call.1} parent=11 // pred_region
          _
        $region20: #{tpu_custom_call.1} parent=11 // pred_fallthru
          _
      $region12: #{tpu_custom_call.1} parent=5 // pred_fallthru
        _
      %p147 = scmp.lt.s32.totalorder %s16, 2
      // Predicated region
      $region21: #{tpu_custom_call.1} parent=5 // pred_check
        %p148 = pneg %p147
      $region22: #{tpu_custom_call.1} parent=5 // pred_check_branch
        %150 = sbr.rel (%p148) target = $region24
      $region23: #{tpu_custom_call.1} parent=5 // pred_region
        // Predicated region
        $region25: #{tpu_custom_call.1} parent=23 // pred_check
          %p151 = pneg %p50
        $region26: #{tpu_custom_call.1} parent=23 // pred_check_branch
          %153 = sbr.rel (%p151) target = $region28
        $region27: #{tpu_custom_call.1} parent=23 // pred_region
          %s154 = sand.u32 %s40, 1
          %s155 = scalar_lea.sflag [#allocation4], %s154
          %s156 = sand.u32 %s40, 1
          %s157 = smul.addr %s156, 128
          %s158 = scalar_lea.vmem [#allocation3], %s157
          %s159 = smul.u32 2, %s24
          %s161 = ssub.s32 2048, 2048
          %162 = vsyncadd %s155, %s161
          %s163 = smul.addr %s23, 16
          %s164 = sadd.s32 %s159, %s163
          %s165 = smul.addr %s164, 128
          %s166 = scalar_lea.hbm %s0, %s165
          %s167 = sshll.u32 %s158, 4
          %s168 = int_to_ptr.vmem [resolvable:$true] %s167
          %173 = dma.hbm_to_vmem [thread:$0]  %s166, 2048, %s168, %s155, 128, 128, 8
        $region28: #{tpu_custom_call.1} parent=23 // pred_fallthru
          _
      $region24: #{tpu_custom_call.1} parent=5 // pred_fallthru
        _
      %p174 = scmp.le.s32.totalorder 1, %s16
      %p175 = scmp.lt.s32.totalorder %s16, 3
      %p176 = pnand %p174, %p175
      %p177 = pneg %p176
      // Predicated region
      $region29: #{tpu_custom_call.1} parent=5 // pred_check
        _
      $region30: #{tpu_custom_call.1} parent=5 // pred_check_branch
        %179 = sbr.rel (%p176) target = $region32
      $region31: #{tpu_custom_call.1} parent=5 // pred_region
        %s180 = ssub.s32 %s16, 1
        %s181 = sand.u32 %s43, 1
        %s182 = scalar_lea.sflag [#allocation4], %s181
        %s183 = sand.u32 %s43, 1
        %s184 = smul.addr %s183, 128
        %s185 = scalar_lea.vmem [#allocation3], %s184
        // Predicated region
        $region33: #{tpu_custom_call.1} parent=31 // pred_check
          %p186 = pneg %p56
        $region34: #{tpu_custom_call.1} parent=31 // pred_check_branch
          %188 = sbr.rel (%p186) target = $region36
        $region35: #{tpu_custom_call.1} parent=31 // pred_region
          %189 = dma.done %s182, 2048
        $region36: #{tpu_custom_call.1} parent=31 // pred_fallthru
          _
        %s190 = sand.u32 %s43, 1
        %s191 = scalar_lea.sflag [#allocation4], %s190
        %s192 = sand.u32 %s43, 1
        %s193 = smul.addr %s192, 128
        %s194 = scalar_lea.vmem [#allocation3], %s193
        %p195 = pneg %p56
        %p196 = pneg %p53
        %p197 = pneg %p77
        %p198 = pneg %p74
        %p199 = pneg %p98
        %p200 = pneg %p95
        %p201 = pneg %p126
        %p202 = pneg %p123
        %s203 = sand.u32 %s113, 1
        %s204 = scalar_lea.sflag [#allocation5], %s203
        %s205 = sand.u32 %s113, 1
        %s206 = smul.addr %s205, 16
        %s207 = scalar_lea.vmem [#allocation6], %s206
        %s208 = smul.u32 2, %s26
        %v209 = vld [vmem:[%s185] sm:$0xff]
        %v210 = vld [vmem:[%s185 + $0x8] sm:$0xff]
        %v211 = vld [vmem:[%s185 + $0x10] sm:$0xff]
        %v212 = vld [vmem:[%s185 + $0x18] sm:$0xff]
        %v213 = vld [vmem:[%s185 + $0x20] sm:$0xff]
        %v214 = vld [vmem:[%s185 + $0x28] sm:$0xff]
        %v215 = vld [vmem:[%s185 + $0x30] sm:$0xff]
        %v216 = vld [vmem:[%s185 + $0x38] sm:$0xff]
        %v217 = vld [vmem:[%s185 + $0x40] sm:$0xff]
        %v218 = vld [vmem:[%s185 + $0x48] sm:$0xff]
        %v219 = vld [vmem:[%s185 + $0x50] sm:$0xff]
        %v220 = vld [vmem:[%s185 + $0x58] sm:$0xff]
        %v221 = vld [vmem:[%s185 + $0x60] sm:$0xff]
        %v222 = vld [vmem:[%s185 + $0x68] sm:$0xff]
        %v223 = vld [vmem:[%s185 + $0x70] sm:$0xff]
        %v224 = vld [vmem:[%s185 + $0x78] sm:$0xff]
        %v225 = vld [vmem:[%s1] sm:$0xff]
        %s226 = sld [smem:[#allocation2]]
        %v228 = vcombine.high %v225, %v225
        %v230 = vunpack.c.l.s4 1966171168
        %v231 = vunpack.c.0.s8 %v230
        %v232 = vlaneseq
        %v233 = vshrl.u32 %v232, 7
        %v234 = vsub.s32 %v231, %v233
        %v235 = vrot.slane %v225, %v234
        %v237 = vunpack.c.l.s4 1966171168
        %v238 = vunpack.c.0.s8 %v237
        %v239 = vlaneseq
        %v240 = vshrl.u32 %v239, 7
        %v241 = vsub.s32 %v238, %v240
        %v242 = vrot.slane %v228, %v241
        %v243 = vcombine.high %v235, %v235
        %v244 = vcombine.high %v242, %v242
        %v246 = vunpack.c.l.s4 1966171168
        %v247 = vunpack.c.0.s8 %v246
        %v248 = vlaneseq
        %v249 = vshrl.u32 %v248, 7
        %v250 = vsub.s32 %v247, %v249
        %v251 = vrot.slane %v235, %v250
        %v253 = vunpack.c.l.s4 1966171168
        %v254 = vunpack.c.0.s8 %v253
        %v255 = vlaneseq
        %v256 = vshrl.u32 %v255, 7
        %v257 = vsub.s32 %v254, %v256
        %v258 = vrot.slane %v242, %v257
        %v260 = vunpack.c.l.s4 1966171168
        %v261 = vunpack.c.0.s8 %v260
        %v262 = vlaneseq
        %v263 = vshrl.u32 %v262, 7
        %v264 = vsub.s32 %v261, %v263
        %v265 = vrot.slane %v243, %v264
        %v267 = vunpack.c.l.s4 1966171168
        %v268 = vunpack.c.0.s8 %v267
        %v269 = vlaneseq
        %v270 = vshrl.u32 %v269, 7
        %v271 = vsub.s32 %v268, %v270
        %v272 = vrot.slane %v244, %v271
        %v273 = vcombine.high %v251, %v251
        %v274 = vcombine.high %v258, %v258
        %v275 = vcombine.high %v265, %v265
        %v276 = vcombine.high %v272, %v272
        %v277 = vlaneseq
        %v278 = vshrl.u32 %v277, 7
        %v279 = vsub.s32 0, %v278
        %v280 = vrot.slane %v251, %v279
        %v281 = vlaneseq
        %v282 = vshrl.u32 %v281, 7
        %v283 = vsub.s32 0, %v282
        %v284 = vrot.slane %v265, %v283
        %v285 = vlaneseq
        %v286 = vshrl.u32 %v285, 7
        %v287 = vsub.s32 0, %v286
        %v288 = vrot.slane %v273, %v287
        %v289 = vlaneseq
        %v290 = vshrl.u32 %v289, 7
        %v291 = vsub.s32 0, %v290
        %v292 = vrot.slane %v275, %v291
        %v293 = vlaneseq
        %v294 = vshrl.u32 %v293, 7
        %v295 = vsub.s32 0, %v294
        %v296 = vrot.slane %v258, %v295
        %v297 = vlaneseq
        %v298 = vshrl.u32 %v297, 7
        %v299 = vsub.s32 0, %v298
        %v300 = vrot.slane %v272, %v299
        %v301 = vlaneseq
        %v302 = vshrl.u32 %v301, 7
        %v303 = vsub.s32 0, %v302
        %v304 = vrot.slane %v274, %v303
        %v305 = vlaneseq
        %v306 = vshrl.u32 %v305, 7
        %v307 = vsub.s32 0, %v306
        %v308 = vrot.slane %v276, %v307
        %309 = vset.pattern.permute.xlu0 0
        %310 = vperm.xlu0 %309, %v280
        %v311 = vpop.permute.xlu0 %310
        %313 = vset.pattern.permute.xlu0 0
        %314 = vperm.xlu0 %313, %v284
        %v315 = vpop.permute.xlu0 %314
        %317 = vset.pattern.permute.xlu0 0
        %318 = vperm.xlu0 %317, %v288
        %v319 = vpop.permute.xlu0 %318
        %321 = vset.pattern.permute.xlu0 0
        %322 = vperm.xlu0 %321, %v292
        %v323 = vpop.permute.xlu0 %322
        %325 = vset.pattern.permute.xlu0 0
        %326 = vperm.xlu0 %325, %v296
        %v327 = vpop.permute.xlu0 %326
        %329 = vset.pattern.permute.xlu0 0
        %330 = vperm.xlu0 %329, %v300
        %v331 = vpop.permute.xlu0 %330
        %333 = vset.pattern.permute.xlu0 0
        %334 = vperm.xlu0 %333, %v304
        %v335 = vpop.permute.xlu0 %334
        %337 = vset.pattern.permute.xlu0 0
        %338 = vperm.xlu0 %337, %v308
        %v339 = vpop.permute.xlu0 %338
        %v341 = vmul.f32 %v209, %v311
        %v342 = vmul.f32 %v210, %v311
        %v343 = vmul.f32 %v211, %v315
        %v344 = vmul.f32 %v212, %v315
        %v345 = vmul.f32 %v213, %v319
        %v346 = vmul.f32 %v214, %v319
        %v347 = vmul.f32 %v215, %v323
        %v348 = vmul.f32 %v216, %v323
        %v349 = vmul.f32 %v217, %v327
        %v350 = vmul.f32 %v218, %v327
        %v351 = vmul.f32 %v219, %v331
        %v352 = vmul.f32 %v220, %v331
        %v353 = vmul.f32 %v221, %v335
        %v354 = vmul.f32 %v222, %v335
        %v355 = vmul.f32 %v223, %v339
        %v356 = vmul.f32 %v224, %v339
        %vm357 = vcmask 130048
        %v358 = vsel %vm357, %v341, 0.0
        %v359 = vsel %vm357, %v343, 0.0
        %v360 = vadd.f32 %v358, %v359
        %v361 = vsel %vm357, %v345, 0.0
        %v362 = vadd.f32 %v360, %v361
        %v363 = vsel %vm357, %v347, 0.0
        %v364 = vadd.f32 %v362, %v363
        %v365 = vsel %vm357, %v349, 0.0
        %v366 = vadd.f32 %v364, %v365
        %v367 = vsel %vm357, %v351, 0.0
        %v368 = vadd.f32 %v366, %v367
        %v369 = vsel %vm357, %v353, 0.0
        %v370 = vadd.f32 %v368, %v369
        %v371 = vsel %vm357, %v355, 0.0
        %v372 = vadd.f32 %v370, %v371
        %v373 = vsel %vm357, %v342, 0.0
        %v374 = vsel %vm357, %v344, 0.0
        %v375 = vadd.f32 %v373, %v374
        %v376 = vsel %vm357, %v346, 0.0
        %v377 = vadd.f32 %v375, %v376
        %v378 = vsel %vm357, %v348, 0.0
        %v379 = vadd.f32 %v377, %v378
        %v380 = vsel %vm357, %v350, 0.0
        %v381 = vadd.f32 %v379, %v380
        %v382 = vsel %vm357, %v352, 0.0
        %v383 = vadd.f32 %v381, %v382
        %v384 = vsel %vm357, %v354, 0.0
        %v385 = vadd.f32 %v383, %v384
        %v386 = vsel %vm357, %v356, 0.0
        %v387 = vadd.f32 %v385, %v386
        %v388 = vstv %s226
        %v389 = vadd.f32 %v372, %v388
        %v390 = vadd.f32 %v387, %v388
        %v391 = vtanh.pop %v389
        %v392 = vtanh.pop %v390
        %v393 = vsel %vm357, %v391, -inf
        %394 = vmax.xlane.f32.xlu0 %v393
        %v395 = vpop.xlane.xlu0 %394
        %v396 = vsel %vm357, %v392, -inf
        %397 = vmax.xlane.f32.xlu0 %v396
        %v398 = vpop.xlane.xlu0 %397
        %v399 = vsub.f32 %v391, %v395
        %v400 = vsub.f32 %v392, %v398
        %v401 = vmul.f32 %v399, 1.442695
        %v402 = vpow.pop %v401
        %v403 = vmul.f32 %v400, 1.442695
        %v404 = vpow.pop %v403
        %v405 = vsel %vm357, %v402, 0.0
        %406 = vadd.xlane.f32.xlu0 %v405
        %v407 = vpop.xlane.xlu0 %406
        %v408 = vsel %vm357, %v404, 0.0
        %409 = vadd.xlane.f32.xlu0 %v408
        %v410 = vpop.xlane.xlu0 %409
        %v411 = vrcp.pop %v407
        %v412 = vrcp.pop %v410
        %v413 = vmul.f32 %v411, 0.25
        %v414 = vmul.f32 %v412, 0.25
        %v415 = vmul.f32 %v402, %v413
        %v416 = vmul.f32 %v404, %v414
        %v417 = vmul.f32 %v415, %v209
        %v418 = vmul.f32 %v416, %v210
        %v419 = vmul.f32 %v415, %v211
        %v420 = vmul.f32 %v416, %v212
        %v421 = vmul.f32 %v415, %v213
        %v422 = vmul.f32 %v416, %v214
        %v423 = vmul.f32 %v415, %v215
        %v424 = vmul.f32 %v416, %v216
        %v425 = vmul.f32 %v415, %v217
        %v426 = vmul.f32 %v416, %v218
        %v427 = vmul.f32 %v415, %v219
        %v428 = vmul.f32 %v416, %v220
        %v429 = vmul.f32 %v415, %v221
        %v430 = vmul.f32 %v416, %v222
        %v431 = vmul.f32 %v415, %v223
        %v432 = vmul.f32 %v416, %v224
        %v433 = vsel %vm357, %v417, 0.0
        %434 = vadd.xlane.f32.xlu0 %v433
        %v435 = vpop.xlane.xlu0 %434
        %v436 = vsel %vm357, %v418, 0.0
        %437 = vadd.xlane.f32.xlu0 %v436
        %v438 = vpop.xlane.xlu0 %437
        %v439 = vsel %vm357, %v419, 0.0
        %440 = vadd.xlane.f32.xlu0 %v439
        %v441 = vpop.xlane.xlu0 %440
        %v442 = vsel %vm357, %v420, 0.0
        %443 = vadd.xlane.f32.xlu0 %v442
        %v444 = vpop.xlane.xlu0 %443
        %v445 = vsel %vm357, %v421, 0.0
        %446 = vadd.xlane.f32.xlu0 %v445
        %v447 = vpop.xlane.xlu0 %446
        %v448 = vsel %vm357, %v422, 0.0
        %449 = vadd.xlane.f32.xlu0 %v448
        %v450 = vpop.xlane.xlu0 %449
        %v451 = vsel %vm357, %v423, 0.0
        %452 = vadd.xlane.f32.xlu0 %v451
        %v453 = vpop.xlane.xlu0 %452
        %v454 = vsel %vm357, %v424, 0.0
        %455 = vadd.xlane.f32.xlu0 %v454
        %v456 = vpop.xlane.xlu0 %455
        %v457 = vsel %vm357, %v425, 0.0
        %458 = vadd.xlane.f32.xlu0 %v457
        %v459 = vpop.xlane.xlu0 %458
        %v460 = vsel %vm357, %v426, 0.0
        %461 = vadd.xlane.f32.xlu0 %v460
        %v462 = vpop.xlane.xlu0 %461
        %v463 = vsel %vm357, %v427, 0.0
        %464 = vadd.xlane.f32.xlu0 %v463
        %v465 = vpop.xlane.xlu0 %464
        %v466 = vsel %vm357, %v428, 0.0
        %467 = vadd.xlane.f32.xlu0 %v466
        %v468 = vpop.xlane.xlu0 %467
        %v469 = vsel %vm357, %v429, 0.0
        %470 = vadd.xlane.f32.xlu0 %v469
        %v471 = vpop.xlane.xlu0 %470
        %v472 = vsel %vm357, %v430, 0.0
        %473 = vadd.xlane.f32.xlu0 %v472
        %v474 = vpop.xlane.xlu0 %473
        %v475 = vsel %vm357, %v431, 0.0
        %476 = vadd.xlane.f32.xlu0 %v475
        %v477 = vpop.xlane.xlu0 %476
        %v478 = vsel %vm357, %v432, 0.0
        %479 = vadd.xlane.f32.xlu0 %v478
        %v480 = vpop.xlane.xlu0 %479
        %v481 = vsel %vm357, %v209, -inf
        %482 = vmax.xlane.f32.xlu0 %v481
        %v483 = vpop.xlane.xlu0 %482
        %v484 = vsel %vm357, %v210, -inf
        %485 = vmax.xlane.f32.xlu0 %v484
        %v486 = vpop.xlane.xlu0 %485
        %v487 = vsel %vm357, %v211, -inf
        %488 = vmax.xlane.f32.xlu0 %v487
        %v489 = vpop.xlane.xlu0 %488
        %v490 = vsel %vm357, %v212, -inf
        %491 = vmax.xlane.f32.xlu0 %v490
        %v492 = vpop.xlane.xlu0 %491
        %v493 = vsel %vm357, %v213, -inf
        %494 = vmax.xlane.f32.xlu0 %v493
        %v495 = vpop.xlane.xlu0 %494
        %v496 = vsel %vm357, %v214, -inf
        %497 = vmax.xlane.f32.xlu0 %v496
        %v498 = vpop.xlane.xlu0 %497
        %v499 = vsel %vm357, %v215, -inf
        %500 = vmax.xlane.f32.xlu0 %v499
        %v501 = vpop.xlane.xlu0 %500
        %v502 = vsel %vm357, %v216, -inf
        %503 = vmax.xlane.f32.xlu0 %v502
        %v504 = vpop.xlane.xlu0 %503
        %v505 = vsel %vm357, %v217, -inf
        %506 = vmax.xlane.f32.xlu0 %v505
        %v507 = vpop.xlane.xlu0 %506
        %v508 = vsel %vm357, %v218, -inf
        %509 = vmax.xlane.f32.xlu0 %v508
        %v510 = vpop.xlane.xlu0 %509
        %v511 = vsel %vm357, %v219, -inf
        %512 = vmax.xlane.f32.xlu0 %v511
        %v513 = vpop.xlane.xlu0 %512
        %v514 = vsel %vm357, %v220, -inf
        %515 = vmax.xlane.f32.xlu0 %v514
        %v516 = vpop.xlane.xlu0 %515
        %v517 = vsel %vm357, %v221, -inf
        %518 = vmax.xlane.f32.xlu0 %v517
        %v519 = vpop.xlane.xlu0 %518
        %v520 = vsel %vm357, %v222, -inf
        %521 = vmax.xlane.f32.xlu0 %v520
        %v522 = vpop.xlane.xlu0 %521
        %v523 = vsel %vm357, %v223, -inf
        %524 = vmax.xlane.f32.xlu0 %v523
        %v525 = vpop.xlane.xlu0 %524
        %v526 = vsel %vm357, %v224, -inf
        %527 = vmax.xlane.f32.xlu0 %v526
        %v528 = vpop.xlane.xlu0 %527
        %v545 = vlaneseq
        %v546 = vand.u32 %v545, 127
        %v547 = vlaneseq
        %v548 = vshrl.u32 %v547, 7
        %v549 = vsub.s32 %v546, %v548
        %v550 = vrot.slane %v483, %v549
        %v551 = vadd.s32 %v546, 4294967288
        %v552 = vlaneseq
        %v553 = vshrl.u32 %v552, 7
        %v554 = vsub.s32 %v551, %v553
        %v555 = vrot.slane %v486, %v554
        %vm556 = vcmask 130112
        %v557 = vsel %vm556, %v555, %v550
        %v558 = vlaneseq
        %v559 = vshrl.u32 %v558, 7
        %v560 = vsub.s32 %v546, %v559
        %v561 = vrot.slane %v489, %v560
        %v562 = vlaneseq
        %v563 = vshrl.u32 %v562, 7
        %v564 = vsub.s32 %v551, %v563
        %v565 = vrot.slane %v492, %v564
        %v566 = vsel %vm556, %v565, %v561
        %v567 = vlaneseq
        %v568 = vshrl.u32 %v567, 7
        %v569 = vsub.s32 %v546, %v568
        %v570 = vrot.slane %v495, %v569
        %v571 = vlaneseq
        %v572 = vshrl.u32 %v571, 7
        %v573 = vsub.s32 %v551, %v572
        %v574 = vrot.slane %v498, %v573
        %v575 = vsel %vm556, %v574, %v570
        %v576 = vlaneseq
        %v577 = vshrl.u32 %v576, 7
        %v578 = vsub.s32 %v546, %v577
        %v579 = vrot.slane %v501, %v578
        %v580 = vlaneseq
        %v581 = vshrl.u32 %v580, 7
        %v582 = vsub.s32 %v551, %v581
        %v583 = vrot.slane %v504, %v582
        %v584 = vsel %vm556, %v583, %v579
        %v585 = vlaneseq
        %v586 = vshrl.u32 %v585, 7
        %v587 = vsub.s32 %v546, %v586
        %v588 = vrot.slane %v507, %v587
        %v589 = vlaneseq
        %v590 = vshrl.u32 %v589, 7
        %v591 = vsub.s32 %v551, %v590
        %v592 = vrot.slane %v510, %v591
        %v593 = vsel %vm556, %v592, %v588
        %v594 = vlaneseq
        %v595 = vshrl.u32 %v594, 7
        %v596 = vsub.s32 %v546, %v595
        %v597 = vrot.slane %v513, %v596
        %v598 = vlaneseq
        %v599 = vshrl.u32 %v598, 7
        %v600 = vsub.s32 %v551, %v599
        %v601 = vrot.slane %v516, %v600
        %v602 = vsel %vm556, %v601, %v597
        %v603 = vlaneseq
        %v604 = vshrl.u32 %v603, 7
        %v605 = vsub.s32 %v546, %v604
        %v606 = vrot.slane %v519, %v605
        %v607 = vlaneseq
        %v608 = vshrl.u32 %v607, 7
        %v609 = vsub.s32 %v551, %v608
        %v610 = vrot.slane %v522, %v609
        %v611 = vsel %vm556, %v610, %v606
        %v612 = vlaneseq
        %v613 = vshrl.u32 %v612, 7
        %v614 = vsub.s32 %v546, %v613
        %v615 = vrot.slane %v525, %v614
        %v616 = vlaneseq
        %v617 = vshrl.u32 %v616, 7
        %v618 = vsub.s32 %v551, %v617
        %v619 = vrot.slane %v528, %v618
        %v620 = vsel %vm556, %v619, %v615
        %vm621 = vcmask 1041409
        %v622 = vsel %vm621, %v566, %v557
        %vm623 = vcmask 1042434
        %v624 = vsel %vm623, %v575, %v622
        %vm625 = vcmask 1043459
        %v626 = vsel %vm625, %v584, %v624
        %vm627 = vcmask 1044484
        %v628 = vsel %vm627, %v593, %v626
        %vm629 = vcmask 1045509
        %v630 = vsel %vm629, %v602, %v628
        %vm631 = vcmask 1046534
        %v632 = vsel %vm631, %v611, %v630
        %vm633 = vcmask 1047559
        %v634 = vsel %vm633, %v620, %v632
        %636 = vst.msk [vmem:[%s207] sm:$0xff] %vm357, %v634
        %v653 = vlaneseq
        %v654 = vshrl.u32 %v653, 7
        %v655 = vsub.s32 %v546, %v654
        %v656 = vrot.slane %v435, %v655
        %v657 = vlaneseq
        %v658 = vshrl.u32 %v657, 7
        %v659 = vsub.s32 %v551, %v658
        %v660 = vrot.slane %v438, %v659
        %v661 = vsel %vm556, %v660, %v656
        %v662 = vlaneseq
        %v663 = vshrl.u32 %v662, 7
        %v664 = vsub.s32 %v546, %v663
        %v665 = vrot.slane %v441, %v664
        %v666 = vlaneseq
        %v667 = vshrl.u32 %v666, 7
        %v668 = vsub.s32 %v551, %v667
        %v669 = vrot.slane %v444, %v668
        %v670 = vsel %vm556, %v669, %v665
        %v671 = vlaneseq
        %v672 = vshrl.u32 %v671, 7
        %v673 = vsub.s32 %v546, %v672
        %v674 = vrot.slane %v447, %v673
        %v675 = vlaneseq
        %v676 = vshrl.u32 %v675, 7
        %v677 = vsub.s32 %v551, %v676
        %v678 = vrot.slane %v450, %v677
        %v679 = vsel %vm556, %v678, %v674
        %v680 = vlaneseq
        %v681 = vshrl.u32 %v680, 7
        %v682 = vsub.s32 %v546, %v681
        %v683 = vrot.slane %v453, %v682
        %v684 = vlaneseq
        %v685 = vshrl.u32 %v684, 7
        %v686 = vsub.s32 %v551, %v685
        %v687 = vrot.slane %v456, %v686
        %v688 = vsel %vm556, %v687, %v683
        %v689 = vlaneseq
        %v690 = vshrl.u32 %v689, 7
        %v691 = vsub.s32 %v546, %v690
        %v692 = vrot.slane %v459, %v691
        %v693 = vlaneseq
        %v694 = vshrl.u32 %v693, 7
        %v695 = vsub.s32 %v551, %v694
        %v696 = vrot.slane %v462, %v695
        %v697 = vsel %vm556, %v696, %v692
        %v698 = vlaneseq
        %v699 = vshrl.u32 %v698, 7
        %v700 = vsub.s32 %v546, %v699
        %v701 = vrot.slane %v465, %v700
        %v702 = vlaneseq
        %v703 = vshrl.u32 %v702, 7
        %v704 = vsub.s32 %v551, %v703
        %v705 = vrot.slane %v468, %v704
        %v706 = vsel %vm556, %v705, %v701
        %v707 = vlaneseq
        %v708 = vshrl.u32 %v707, 7
        %v709 = vsub.s32 %v546, %v708
        %v710 = vrot.slane %v471, %v709
        %v711 = vlaneseq
        %v712 = vshrl.u32 %v711, 7
        %v713 = vsub.s32 %v551, %v712
        %v714 = vrot.slane %v474, %v713
        %v715 = vsel %vm556, %v714, %v710
        %v716 = vlaneseq
        %v717 = vshrl.u32 %v716, 7
        %v718 = vsub.s32 %v546, %v717
        %v719 = vrot.slane %v477, %v718
        %v720 = vlaneseq
        %v721 = vshrl.u32 %v720, 7
        %v722 = vsub.s32 %v551, %v721
        %v723 = vrot.slane %v480, %v722
        %v724 = vsel %vm556, %v723, %v719
        %v725 = vsel %vm621, %v670, %v661
        %v726 = vsel %vm623, %v679, %v725
        %v727 = vsel %vm625, %v688, %v726
        %v728 = vsel %vm627, %v697, %v727
        %v729 = vsel %vm629, %v706, %v728
        %v730 = vsel %vm631, %v715, %v729
        %v731 = vsel %vm633, %v724, %v730
        %733 = vst.msk [vmem:[%s207 + $0x8] sm:$0xff] %vm357, %v731
        %s734 = sand.u32 %s113, 1
        %s735 = scalar_lea.sflag [#allocation5], %s734
        %s736 = sand.u32 %s113, 1
        %s737 = smul.addr %s736, 16
        %s738 = scalar_lea.vmem [#allocation6], %s737
        // Predicated region
        $region37: #{tpu_custom_call.1} parent=31 // pred_check
          %p739 = pneg %p123
        $region38: #{tpu_custom_call.1} parent=31 // pred_check_branch
          %741 = sbr.rel (%p739) target = $region40
        $region39: #{tpu_custom_call.1} parent=31 // pred_region
          %s743 = ssub.s32 256, 256
          %744 = vsyncadd %s735, %s743
          %s745 = smul.addr %s25, 2
          %s746 = sadd.s32 %s26, %s745
          %s747 = smul.addr %s746, 128
          %s748 = scalar_lea.hbm %s3, %s747
          %s749 = sshll.u32 %s738, 4
          %s750 = int_to_ptr.vmem [resolvable:$true] %s749
          %755 = dma.vmem_to_hbm [thread:$0]  %s750, 256, %s748, %s735, 128, 128, 8
        $region40: #{tpu_custom_call.1} parent=31 // pred_fallthru
          _
      $region32: #{tpu_custom_call.1} parent=5 // pred_fallthru
        _
      %p756 = scmp.le.s32.totalorder 2, %s16
      // Predicated region
      $region41: #{tpu_custom_call.1} parent=5 // pred_check
        %p757 = pneg %p756
      $region42: #{tpu_custom_call.1} parent=5 // pred_check_branch
        %759 = sbr.rel (%p757) target = $region44
      $region43: #{tpu_custom_call.1} parent=5 // pred_region
        %s760 = ssub.s32 %s16, 2
        // Predicated region
        $region45: #{tpu_custom_call.1} parent=43 // pred_check
          %p761 = pneg %p129
        $region46: #{tpu_custom_call.1} parent=43 // pred_check_branch
          %763 = sbr.rel (%p761) target = $region48
        $region47: #{tpu_custom_call.1} parent=43 // pred_region
          %s764 = sand.u32 %s114, 1
          %s765 = scalar_lea.sflag [#allocation5], %s764
          %s766 = sand.u32 %s114, 1
          %s767 = smul.addr %s766, 16
          %s768 = scalar_lea.vmem [#allocation6], %s767
          %769 = dma.done %s765, 256
        $region48: #{tpu_custom_call.1} parent=43 // pred_fallthru
          _
      $region44: #{tpu_custom_call.1} parent=5 // pred_fallthru
        _
    $region6: #{tpu_custom_call.1} parent=1 // loop_footer
      %s20 = sadd.s32 1, %s16
    $region7: #{tpu_custom_call.1} parent=1 // loop_footer_branch
      %15 = sbr.rel target = $region3
    $region8: #{tpu_custom_call.1} parent=1 // loop_exit
      _
    %770 = vsyncpa [#allocation4], 1
    %s771 = scalar_lea.sflag [#allocation4], 1
    %772 = vsyncpa %s771, 1
    %773 = vsyncpa [#allocation5], 1
    %s774 = scalar_lea.sflag [#allocation5], 1
    %775 = vsyncpa %s774, 1

</llo_original>
